<compile_context>
chip_gen: v7x
topology: tpu7x:2x2x1
jax: 0.10.0
libtpu: 0.0.40
codegen_flags: <defaults>
</compile_context>

<pallas_src>
import jax
import jax.numpy as jnp
from jax import lax
from jax.experimental import pallas as pl
from jax.experimental.pallas import tpu as pltpu

LR = 0.01  # SGD learning rate (optimizer hyper-parameter, baked in)


def trainer_step_kernel(x_ref, w_ref, b_ref, t_ref,
                        out_ref, loss_ref, w_new_ref, b_new_ref):
    x = x_ref[...]            # (B, Din)    f32
    w = w_ref[...]            # (Dout, Din) f32
    b = b_ref[...]            # (1, Dout)   f32
    t = t_ref[...]            # (B, Dout)   f32

    # ---- forward: out = x @ W.T + b (nn.Linear), contraction on Din axes ----
    out = lax.dot_general(x, w, (((1,), (1,)), ((), ())),
                          preferred_element_type=jnp.float32) + b   # (B, Dout)
    out_ref[...] = out

    # ---- loss + dL/dout in a single pass over diff ----
    n = out.shape[0] * out.shape[1]
    diff = out - t
    g = diff * (2.0 / n)                       # dL/dout          (B, Dout)
    loss_ref[0, 0] = 0.5 * jnp.sum(diff * g)   # == mean(diff^2)  (scalar -> SMEM)

    # ---- backward: dW = g.T @ x via dot_general contracting the batch axes ----
    dW = lax.dot_general(g, x, (((0,), (0,)), ((), ())),
                         preferred_element_type=jnp.float32)        # (Dout, Din)
    db = jnp.sum(g, axis=0, keepdims=True)                          # (1, Dout)

    # ---- SGD step (written into the aliased parameter buffers) ----
    w_new_ref[...] = w - LR * dW
    b_new_ref[...] = b - LR * db


def _trainer_step(x, w, b, target):
    """One fused training step. Returns (loss, output, new_w, new_b)."""
    B, Din = x.shape
    Dout = w.shape[0]

    full = lambda shape: pl.BlockSpec(shape, lambda i: (0,) * len(shape))

    out, loss, w_new, b_new = pl.pallas_call(
        trainer_step_kernel,
        out_shape=(
            jax.ShapeDtypeStruct((B, Dout), jnp.float32),     # output
            jax.ShapeDtypeStruct((1, 1), jnp.float32),        # loss (SMEM)
            jax.ShapeDtypeStruct((Dout, Din), jnp.float32),   # updated W
            jax.ShapeDtypeStruct((1, Dout), jnp.float32),     # updated b
        ),
        grid=(1,),
        in_specs=[
            full((B, Din)),       # x
            full((Dout, Din)),    # w
            full((1, Dout)),      # b
            full((B, Dout)),      # target
        ],
        out_specs=(
            full((B, Dout)),
            pl.BlockSpec(memory_space=pltpu.MemorySpace.SMEM),
            full((Dout, Din)),
            full((1, Dout)),
        ),
        # w -> w_new, b -> b_new share buffers: no duplicate param writeback.
        input_output_aliases={1: 2, 2: 3},
        compiler_params=pltpu.CompilerParams(
            dimension_semantics=("arbitrary",)),
    )(x, w, b, target)

    return loss[0, 0], out, w_new, b_new


trainer_step = jax.jit(_trainer_step)


class Trainer:
    """JAX analogue of the PyTorch Trainer: holds model params + optimizer state."""

    def __init__(self, w, b):
        self.w = w
        self.b = b
        # TODO(synk): save()/load() (torch.save / state_dict checkpointing) are
        # host-side I/O with no Pallas equivalent; intentionally omitted.

    def forward(self, inp, target):
        loss, out, w_new, b_new = trainer_step(inp, self.w, self.b, target)
        self.w, self.b = w_new, b_new        # optim.step() applied
        return loss, out

    __call__ = forward


if __name__ == "__main__":
    # Lane/sublane aligned small shapes: B multiple of 8, Din/Dout multiple of 128.
    B, Din, Dout = 8, 128, 128

    key = jax.random.PRNGKey(0)
    kx, kt, kw, kb = jax.random.split(key, 4)

    x = jax.random.normal(kx, (B, Din), dtype=jnp.float32)
    target = jax.random.normal(kt, (B, Dout), dtype=jnp.float32)

    # deterministic "model" parameters (nn.Linear(Din, Dout)-like shapes)
    w0 = jax.random.normal(kw, (Dout, Din), dtype=jnp.float32) * 0.1
    b0 = jax.random.normal(kb, (1, Dout), dtype=jnp.float32) * 0.1

    trainer = Trainer(w0, b0)
    loss, out = trainer(x, target)
    jax.block_until_ready((loss, out, trainer.w, trainer.b))

    # pure-JAX reference of the same fused step
    ref_out = x @ w0.T + b0
    ref_diff = ref_out - target
    ref_loss = jnp.mean(ref_diff ** 2)
    g = ref_diff * (2.0 / (B * Dout))
    ref_w = w0 - LR * (g.T @ x)
    ref_b = b0 - LR * jnp.sum(g, axis=0, keepdims=True)

    assert jnp.allclose(out, ref_out, rtol=1e-3, atol=1e-3)
    assert jnp.allclose(loss, ref_loss, rtol=1e-3, atol=1e-3)
    assert jnp.allclose(trainer.w, ref_w, rtol=1e-3, atol=1e-3)
    assert jnp.allclose(trainer.b, ref_b, rtol=1e-3, atol=1e-3)

    print("KERNEL_OK")
</pallas_src>

<mosaic_0001>
module attributes {stable_mosaic.version = 11 : i64} {
  func.func @trainer_step_kernel(%arg0: i32, %arg1: memref<8x128xf32, #tpu.memory_space<vmem>>, %arg2: memref<128x128xf32, #tpu.memory_space<vmem>>, %arg3: memref<1x128xf32, #tpu.memory_space<vmem>>, %arg4: memref<8x128xf32, #tpu.memory_space<vmem>>, %arg5: memref<8x128xf32, #tpu.memory_space<vmem>>, %arg6: memref<1x1xf32, #tpu.memory_space<smem>>, %arg7: memref<128x128xf32, #tpu.memory_space<vmem>>, %arg8: memref<1x128xf32, #tpu.memory_space<vmem>>) attributes {dimension_semantics = [#tpu.dimension_semantics<arbitrary>], iteration_bounds = array<i64: 1>, scalar_prefetch = 0 : i64, scratch_operands = 0 : i64, tpu.core_type = #tpu.core_type<tc>, window_params = [{pipeline_mode = #tpu.pipeline_mode<synchronous>, transform_indices = @transform_0, window_bounds = array<i64: 8, 128>}, {pipeline_mode = #tpu.pipeline_mode<synchronous>, transform_indices = @transform_1, window_bounds = array<i64: 128, 128>}, {pipeline_mode = #tpu.pipeline_mode<synchronous>, transform_indices = @transform_2, window_bounds = array<i64: 1, 128>}, {pipeline_mode = #tpu.pipeline_mode<synchronous>, transform_indices = @transform_3, window_bounds = array<i64: 8, 128>}, {pipeline_mode = #tpu.pipeline_mode<synchronous>, transform_indices = @transform_4, window_bounds = array<i64: 8, 128>}, {transform_indices = @transform_5, window_bounds = array<i64: 1, 1>}, {pipeline_mode = #tpu.pipeline_mode<synchronous>, transform_indices = @transform_6, window_bounds = array<i64: 128, 128>}, {pipeline_mode = #tpu.pipeline_mode<synchronous>, transform_indices = @transform_7, window_bounds = array<i64: 1, 128>}]} {
    %c0 = arith.constant 0 : index
    %c0_0 = arith.constant 0 : index
    %0 = vector.load %arg1[%c0, %c0_0] : memref<8x128xf32, #tpu.memory_space<vmem>>, vector<8x128xf32>
    %c0_1 = arith.constant 0 : index
    %c0_2 = arith.constant 0 : index
    %1 = vector.load %arg2[%c0_1, %c0_2] : memref<128x128xf32, #tpu.memory_space<vmem>>, vector<128x128xf32>
    %c0_3 = arith.constant 0 : index
    %c0_4 = arith.constant 0 : index
    %2 = vector.load %arg3[%c0_3, %c0_4] : memref<1x128xf32, #tpu.memory_space<vmem>>, vector<1x128xf32>
    %c0_5 = arith.constant 0 : index
    %c0_6 = arith.constant 0 : index
    %3 = vector.load %arg4[%c0_5, %c0_6] : memref<8x128xf32, #tpu.memory_space<vmem>>, vector<8x128xf32>
    %cst = arith.constant dense<0.000000e+00> : vector<8x128xf32>
    %4 = tpu.matmul %0, %1, %cst {dimension_numbers = #tpu.dot_dimension_numbers<[1], [1], [0], [0], [0, 0, 1, 0], [], []>} : vector<8x128xf32>, vector<128x128xf32>, vector<8x128xf32> -> vector<8x128xf32>
    %5 = vector.broadcast %2 : vector<1x128xf32> to vector<8x128xf32>
    %6 = arith.addf %4, %5 : vector<8x128xf32>
    %c0_7 = arith.constant 0 : index
    %c0_8 = arith.constant 0 : index
    %7 = vector.load %arg5[%c0_7, %c0_8] : memref<8x128xf32, #tpu.memory_space<vmem>>, vector<8x128xf32>
    tpu.vector_store %arg5[%c0_7, %c0_8], %6 {strides = array<i32>} : memref<8x128xf32, #tpu.memory_space<vmem>>, vector<8x128xf32>,
    %8 = arith.subf %6, %3 : vector<8x128xf32>
    %cst_9 = arith.constant 0.001953125 : f32
    %9 = vector.broadcast %cst_9 : f32 to vector<8x128xf32>
    %10 = arith.mulf %8, %9 : vector<8x128xf32>
    %11 = arith.mulf %8, %10 : vector<8x128xf32>
    %12 = vector.shape_cast %11 : vector<8x128xf32> to vector<1x8x128xf32>
    %cst_10 = arith.constant dense<0.000000e+00> : vector<1xf32>
    %13 = vector.multi_reduction <add>, %12, %cst_10 [1, 2] : vector<1x8x128xf32> to vector<1xf32>
    %14 = vector.shape_cast %13 : vector<1xf32> to vector<1x1x1xf32>
    %15 = vector.extract %14[0, 0, 0] : f32 from vector<1x1x1xf32>
    %cst_11 = arith.constant 5.000000e-01 : f32
    %16 = arith.mulf %cst_11, %15 : f32
    %c0_12 = arith.constant 0 : index
    %c0_13 = arith.constant 0 : index
    %17 = memref.load %arg6[%c0_12, %c0_13] : memref<1x1xf32, #tpu.memory_space<smem>>
    memref.store %16, %arg6[%c0_12, %c0_13] : memref<1x1xf32, #tpu.memory_space<smem>>
    %cst_14 = arith.constant dense<0.000000e+00> : vector<128x128xf32>
    %18 = tpu.matmul %10, %0, %cst_14 {dimension_numbers = #tpu.dot_dimension_numbers<[0], [0], [1], [1], [0, 1, 1, 1], [], []>} : vector<8x128xf32>, vector<8x128xf32>, vector<128x128xf32> -> vector<128x128xf32>
    %cst_15 = arith.constant dense<0.000000e+00> : vector<128xf32>
    %19 = vector.multi_reduction <add>, %10, %cst_15 [0] : vector<8x128xf32> to vector<128xf32>
    %20 = vector.shape_cast %19 : vector<128xf32> to vector<1x128xf32>
    %cst_16 = arith.constant 0.00999999977 : f32
    %21 = vector.broadcast %cst_16 : f32 to vector<128x128xf32>
    %22 = arith.mulf %21, %18 : vector<128x128xf32>
    %23 = arith.subf %1, %22 : vector<128x128xf32>
    %c0_17 = arith.constant 0 : index
    %c0_18 = arith.constant 0 : index
    %24 = vector.load %arg7[%c0_17, %c0_18] : memref<128x128xf32, #tpu.memory_space<vmem>>, vector<128x128xf32>
    tpu.vector_store %arg7[%c0_17, %c0_18], %23 {strides = array<i32>} : memref<128x128xf32, #tpu.memory_space<vmem>>, vector<128x128xf32>,
    %cst_19 = arith.constant 0.00999999977 : f32
    %25 = vector.broadcast %cst_19 : f32 to vector<1x128xf32>
    %26 = arith.mulf %25, %20 : vector<1x128xf32>
    %27 = arith.subf %2, %26 : vector<1x128xf32>
    %c0_20 = arith.constant 0 : index
    %c0_21 = arith.constant 0 : index
    %28 = vector.load %arg8[%c0_20, %c0_21] : memref<1x128xf32, #tpu.memory_space<vmem>>, vector<1x128xf32>
    tpu.vector_store %arg8[%c0_20, %c0_21], %27 {strides = array<i32>} : memref<1x128xf32, #tpu.memory_space<vmem>>, vector<1x128xf32>,
    return
  }
  func.func @transform_0(%arg0: i32) -> (i32, i32) {
    %c0_i32 = arith.constant 0 : i32
    %c0_i32_0 = arith.constant 0 : i32
    %c0_i32_1 = arith.constant 0 : i32
    return %c0_i32, %c0_i32_0 : i32, i32
  }
  func.func @transform_1(%arg0: i32) -> (i32, i32) {
    %c0_i32 = arith.constant 0 : i32
    %c0_i32_0 = arith.constant 0 : i32
    %c0_i32_1 = arith.constant 0 : i32
    return %c0_i32, %c0_i32_0 : i32, i32
  }
  func.func @transform_2(%arg0: i32) -> (i32, i32) {
    %c0_i32 = arith.constant 0 : i32
    %c0_i32_0 = arith.constant 0 : i32
    %c0_i32_1 = arith.constant 0 : i32
    return %c0_i32, %c0_i32_0 : i32, i32
  }
  func.func @transform_3(%arg0: i32) -> (i32, i32) {
    %c0_i32 = arith.constant 0 : i32
    %c0_i32_0 = arith.constant 0 : i32
    %c0_i32_1 = arith.constant 0 : i32
    return %c0_i32, %c0_i32_0 : i32, i32
  }
  func.func @transform_4(%arg0: i32) -> (i32, i32) {
    %c0_i32 = arith.constant 0 : i32
    %c0_i32_0 = arith.constant 0 : i32
    %c0_i32_1 = arith.constant 0 : i32
    return %c0_i32, %c0_i32_0 : i32, i32
  }
  func.func @transform_5(%arg0: i32) -> (i32, i32) {
    %c0_i32 = arith.constant 0 : i32
    %c0_i32_0 = arith.constant 0 : i32
    %c0_i32_1 = arith.constant 0 : i32
    return %c0_i32, %c0_i32_0 : i32, i32
  }
  func.func @transform_6(%arg0: i32) -> (i32, i32) {
    %c0_i32 = arith.constant 0 : i32
    %c0_i32_0 = arith.constant 0 : i32
    %c0_i32_1 = arith.constant 0 : i32
    return %c0_i32, %c0_i32_0 : i32, i32
  }
  func.func @transform_7(%arg0: i32) -> (i32, i32) {
    %c0_i32 = arith.constant 0 : i32
    %c0_i32_0 = arith.constant 0 : i32
    %c0_i32_1 = arith.constant 0 : i32
    return %c0_i32, %c0_i32_0 : i32, i32
  }
}

</mosaic_0001>

<llo_original>
// kernel: _trainer_step.1
$region0: #{_trainer_step.1}
  #allocation0 [shape = 'u32[]', space=smem, size = 0x4, offset = 0x4, fixed_abs, tag = 'smem constant byte address 0x4 - core index']
  #allocation1 [shape = 'u32[144,128]{1,0:T(1,128)}', space=vmem, size = 0x12000, scoped, tag = 'internal scratch']
  %s0 = inlined_call_operand.vmem [shape: f32[8,128], index: 0, kind: input, shape index: {}]
  %s1 = inlined_call_operand.vmem [shape: f32[128,128], index: 1, kind: input, shape index: {}, may-alias: {1,6}]
  %s2 = inlined_call_operand.vmem [shape: f32[1,128], index: 2, kind: input, shape index: {}, may-alias: {2,7}]
  %s3 = inlined_call_operand.vmem [shape: f32[8,128], index: 3, kind: input, shape index: {}]
  %s4 = inlined_call_operand.hbm [shape: f32[8,128], index: 4, kind: output, shape index: {0}]
  %s5 = inlined_call_operand.hbm [shape: f32[1,1], index: 5, kind: output, shape index: {1}]
  %s6 = inlined_call_operand.vmem [shape: f32[128,128], index: 6, kind: output, shape index: {2}, may-alias: {1,6}]
  %s7 = inlined_call_operand.vmem [shape: f32[1,128], index: 7, kind: output, shape index: {3}, may-alias: {2,7}]
  %8 = xla_tuple %s4, %s5, %s6, %s7
  %s9 = sld [smem:[#allocation0]]
  $region50: #{_trainer_step.1} parent=0
    _
  %s11 = ssub.s32 1, %s9
  %s12 = scalar_select 0, %s11, %s9
  $region1: #{_trainer_step.1} parent=0
    #allocation2 [shape = 'u8[4096]{0}', space=vmem, size = 0x1000, scoped, tag = 'output window, operand 0, single buffered']
    #allocation3 [shape = 's32[1]{0}', space=sflag, size = 0x4, scoped, tag = 'scoped memory for _trainer_step.1']
    #allocation4 [shape = 's32[1]{0}', space=sflag, size = 0x4, scoped, tag = 'scoped memory for _trainer_step.1']
    #allocation5 [shape = 'u8[512]{0}', space=smem, size = 0x200, scoped, tag = 'output window, operand 1, single buffered']
    %13 = vsyncpa [#allocation3], 0
    %14 = vsyncpa [#allocation4], 0
    // Predicated region
    $region2: #{_trainer_step.1} parent=1 // pred_check
      _
    $region3: #{_trainer_step.1} parent=1 // pred_check_branch
      %16 = sbr.rel (0) target = $region5
    $region4: #{_trainer_step.1} parent=1 // pred_region
      _
    $region5: #{_trainer_step.1} parent=1 // pred_fallthru
      _
    // Predicated region
    $region6: #{_trainer_step.1} parent=1 // pred_check
      _
    $region7: #{_trainer_step.1} parent=1 // pred_check_branch
      %18 = sbr.rel (0) target = $region9
    $region8: #{_trainer_step.1} parent=1 // pred_region
      _
    $region9: #{_trainer_step.1} parent=1 // pred_fallthru
      _
    // Predicated region
    $region10: #{_trainer_step.1} parent=1 // pred_check
      _
    $region11: #{_trainer_step.1} parent=1 // pred_check_branch
      %20 = sbr.rel (0) target = $region13
    $region12: #{_trainer_step.1} parent=1 // pred_region
      _
    $region13: #{_trainer_step.1} parent=1 // pred_fallthru
      _
    // Predicated region
    $region14: #{_trainer_step.1} parent=1 // pred_check
      _
    $region15: #{_trainer_step.1} parent=1 // pred_check_branch
      %22 = sbr.rel (0) target = $region17
    $region16: #{_trainer_step.1} parent=1 // pred_region
      _
    $region17: #{_trainer_step.1} parent=1 // pred_fallthru
      _
    %v23 = vld [vmem:[%s0] sm:$0xff]
    %v24 = vld [vmem:[%s1] sm:$0xff]
    %v25 = vld [vmem:[%s1 + $0x8] sm:$0xff]
    %v26 = vld [vmem:[%s1 + $0x10] sm:$0xff]
    %v27 = vld [vmem:[%s1 + $0x18] sm:$0xff]
    %v28 = vld [vmem:[%s1 + $0x20] sm:$0xff]
    %v29 = vld [vmem:[%s1 + $0x28] sm:$0xff]
    %v30 = vld [vmem:[%s1 + $0x30] sm:$0xff]
    %v31 = vld [vmem:[%s1 + $0x38] sm:$0xff]
    %v32 = vld [vmem:[%s1 + $0x40] sm:$0xff]
    %v33 = vld [vmem:[%s1 + $0x48] sm:$0xff]
    %v34 = vld [vmem:[%s1 + $0x50] sm:$0xff]
    %v35 = vld [vmem:[%s1 + $0x58] sm:$0xff]
    %v36 = vld [vmem:[%s1 + $0x60] sm:$0xff]
    %v37 = vld [vmem:[%s1 + $0x68] sm:$0xff]
    %v38 = vld [vmem:[%s1 + $0x70] sm:$0xff]
    %v39 = vld [vmem:[%s1 + $0x78] sm:$0xff]
    %v40 = vld [vmem:[%s2] sm:$0x1]
    %v41 = vld [vmem:[%s3] sm:$0xff]
    %v43 = vlaneseq
    %v44 = vshrl.u32 %v43, 7
    %v45 = vsub.s32 0, %v44
    %v46 = vrot.slane %v40, %v45
    %48 = vmatprep.subr.mxu0 0.0
    %49 = vmatpush1.xpose.msra.mxu0 %v24
    %50 = vmatprep.subr.mxu0 0.0
    %51 = vmatpush1.xpose.msra.mxu0 %v25
    %52 = vmatprep.subr.mxu0 0.0
    %53 = vmatpush1.xpose.msra.mxu0 %v26
    %54 = vmatprep.subr.mxu0 0.0
    %55 = vmatpush1.xpose.msra.mxu0 %v27
    %56 = vmatprep.subr.mxu0 0.0
    %57 = vmatpush1.xpose.msra.mxu0 %v28
    %58 = vmatprep.subr.mxu0 0.0
    %59 = vmatpush1.xpose.msra.mxu0 %v29
    %60 = vmatprep.subr.mxu0 0.0
    %61 = vmatpush1.xpose.msra.mxu0 %v30
    %62 = vmatprep.subr.mxu0 0.0
    %63 = vmatpush1.xpose.msra.mxu0 %v31
    %64 = vmatprep.subr.mxu0 0.0
    %65 = vmatpush1.xpose.msra.mxu0 %v32
    %66 = vmatprep.subr.mxu0 0.0
    %67 = vmatpush1.xpose.msra.mxu0 %v33
    %68 = vmatprep.subr.mxu0 0.0
    %69 = vmatpush1.xpose.msra.mxu0 %v34
    %70 = vmatprep.subr.mxu0 0.0
    %71 = vmatpush1.xpose.msra.mxu0 %v35
    %72 = vmatprep.subr.mxu0 0.0
    %73 = vmatpush1.xpose.msra.mxu0 %v36
    %74 = vmatprep.subr.mxu0 0.0
    %75 = vmatpush1.xpose.msra.mxu0 %v37
    %76 = vmatprep.subr.mxu0 0.0
    %77 = vmatpush1.xpose.msra.mxu0 %v38
    %78 = vmatprep.subr.mxu0 0.0
    %79 = vmatpush1.xpose.msra.mxu0 %v39
    %80 = vmatprep.subr.mxu0 0.0
    %81 = vmatpush1.xpose.msra.mxu0 0.0
    %82 = vmatprep.subr.mxu0 0.0
    %83 = vmatpush1.xpose.msra.mxu0 0.0
    %84 = vmatprep.subr.mxu0 0.0
    %85 = vmatpush1.xpose.msra.mxu0 0.0
    %86 = vmatprep.subr.mxu0 0.0
    %87 = vmatpush1.xpose.msra.mxu0 0.0
    %88 = vmatprep.subr.mxu0 0.0
    %89 = vmatpush1.xpose.msra.mxu0 0.0
    %90 = vmatprep.subr.mxu0 0.0
    %91 = vmatpush1.xpose.msra.mxu0 0.0
    %92 = vmatprep.subr.mxu0 0.0
    %93 = vmatpush1.xpose.msra.mxu0 0.0
    %94 = vmatprep.subr.mxu0 0.0
    %95 = vmatpush1.xpose.msra.mxu0 0.0
    %96 = vmatprep.subr.mxu0 0.0
    %97 = vmatpush1.xpose.msra.mxu0 0.0
    %98 = vmatprep.subr.mxu0 0.0
    %99 = vmatpush1.xpose.msra.mxu0 0.0
    %100 = vmatprep.subr.mxu0 0.0
    %101 = vmatpush1.xpose.msra.mxu0 0.0
    %102 = vmatprep.subr.mxu0 0.0
    %103 = vmatpush1.xpose.msra.mxu0 0.0
    %104 = vmatprep.subr.mxu0 0.0
    %105 = vmatpush1.xpose.msra.mxu0 0.0
    %106 = vmatprep.subr.mxu0 0.0
    %107 = vmatpush1.xpose.msra.mxu0 0.0
    %108 = vmatprep.subr.mxu0 0.0
    %109 = vmatpush1.xpose.msra.mxu0 0.0
    %110 = vmatprep.subr.mxu0 0.0
    %111 = vmatpush1.xpose.msra.mxu0 0.0
    %112 = vmatprep.mubr.f32.mxu0 0.0
    %113 = vmatmul.mubr.f32.gmra.mrb[0].mxu0 %v23
    %v114 = vpop.f32.mrb[0].mxu0
    %v115 = vadd.f32 %v46, %v114
    %v116 = vpop.f32.mrb[0].mxu0
    %117 = vdwg.mxu0
    %118 = vst [vmem:[#allocation2] sm:$0xff] %v115
    %v119 = vsub.f32 %v115, %v41
    %v120 = vmul.f32 %v119, 0.001953125
    %v121 = vmul.f32 %v119, %v120
    %122 = vadd.xlane.f32.xlu0 %v121
    %v123 = vpop.xlane.xlu0 %122
    %v124 = vrot.slane %v123, 4
    %v125 = vadd.f32 %v123, %v124
    %v126 = vrot.slane %v125, 2
    %v127 = vadd.f32 %v125, %v126
    %v128 = vrot.slane %v127, 1
    %v129 = vadd.f32 %v127, %v128
    %s130 = vtos %v129
    %s131 = smul.f32 %s130, 0.5
    %s132 = scalar_lea.smem [#allocation5], 0
    %133 = sst [smem:[%s132]] %s131
    %134 = vxpose.xlu0.b32.start [1/16] %v120, 128
    %135 = vxpose.xlu0.b32.cont [2/16] 0.0, 128
    %136 = vxpose.xlu0.b32.cont [3/16] 0.0, 128
    %137 = vxpose.xlu0.b32.cont [4/16] 0.0, 128
    %138 = vxpose.xlu0.b32.cont [5/16] 0.0, 128
    %139 = vxpose.xlu0.b32.cont [6/16] 0.0, 128
    %140 = vxpose.xlu0.b32.cont [7/16] 0.0, 128
    %141 = vxpose.xlu0.b32.cont [8/16] 0.0, 128
    %142 = vxpose.xlu0.b32.cont [9/16] 0.0, 128
    %143 = vxpose.xlu0.b32.cont [10/16] 0.0, 128
    %144 = vxpose.xlu0.b32.cont [11/16] 0.0, 128
    %145 = vxpose.xlu0.b32.cont [12/16] 0.0, 128
    %146 = vxpose.xlu0.b32.cont [13/16] 0.0, 128
    %147 = vxpose.xlu0.b32.cont [14/16] 0.0, 128
    %148 = vxpose.xlu0.b32.cont [15/16] 0.0, 128
    %149 = vxpose.xlu0.b32.end [16/16] 0.0, 128
    %v150 = vpop.trf.xlu0
    %v151 = vpop.trf.xlu0
    %v152 = vpop.trf.xlu0
    %v153 = vpop.trf.xlu0
    %v154 = vpop.trf.xlu0
    %v155 = vpop.trf.xlu0
    %v156 = vpop.trf.xlu0
    %v157 = vpop.trf.xlu0
    %v158 = vpop.trf.xlu0
    %v159 = vpop.trf.xlu0
    %v160 = vpop.trf.xlu0
    %v161 = vpop.trf.xlu0
    %v162 = vpop.trf.xlu0
    %v163 = vpop.trf.xlu0
    %v164 = vpop.trf.xlu0
    %v165 = vpop.trf.xlu0
    %vm166 = vcmask 64512
    %v168 = vsel %vm166, %v150, 0
    %v171 = vsel %vm166, %v151, 0
    %v174 = vsel %vm166, %v152, 0
    %v177 = vsel %vm166, %v153, 0
    %v180 = vsel %vm166, %v154, 0
    %v183 = vsel %vm166, %v155, 0
    %v186 = vsel %vm166, %v156, 0
    %v189 = vsel %vm166, %v157, 0
    %v192 = vsel %vm166, %v158, 0
    %v195 = vsel %vm166, %v159, 0
    %v198 = vsel %vm166, %v160, 0
    %v201 = vsel %vm166, %v161, 0
    %v204 = vsel %vm166, %v162, 0
    %v207 = vsel %vm166, %v163, 0
    %v210 = vsel %vm166, %v164, 0
    %v213 = vsel %vm166, %v165, 0
    %215 = vmatprep.subr.mxu0 0.0
    %216 = vmatpush1.msra.mxu0 %v23
    %217 = vmatprep.subr.mxu0 0.0
    %218 = vmatpush1.msra.mxu0 0.0
    %219 = vmatprep.subr.mxu0 0.0
    %220 = vmatpush1.msra.mxu0 0.0
    %221 = vmatprep.subr.mxu0 0.0
    %222 = vmatpush1.msra.mxu0 0.0
    %223 = vmatprep.subr.mxu0 0.0
    %224 = vmatpush1.msra.mxu0 0.0
    %225 = vmatprep.subr.mxu0 0.0
    %226 = vmatpush1.msra.mxu0 0.0
    %227 = vmatprep.subr.mxu0 0.0
    %228 = vmatpush1.msra.mxu0 0.0
    %229 = vmatprep.subr.mxu0 0.0
    %230 = vmatpush1.msra.mxu0 0.0
    %231 = vmatprep.subr.mxu0 0.0
    %232 = vmatpush1.msra.mxu0 0.0
    %233 = vmatprep.subr.mxu0 0.0
    %234 = vmatpush1.msra.mxu0 0.0
    %235 = vmatprep.subr.mxu0 0.0
    %236 = vmatpush1.msra.mxu0 0.0
    %237 = vmatprep.subr.mxu0 0.0
    %238 = vmatpush1.msra.mxu0 0.0
    %239 = vmatprep.subr.mxu0 0.0
    %240 = vmatpush1.msra.mxu0 0.0
    %241 = vmatprep.subr.mxu0 0.0
    %242 = vmatpush1.msra.mxu0 0.0
    %243 = vmatprep.subr.mxu0 0.0
    %244 = vmatpush1.msra.mxu0 0.0
    %245 = vmatprep.subr.mxu0 0.0
    %246 = vmatpush1.msra.mxu0 0.0
    %247 = vmatprep.subr.mxu0 0.0
    %248 = vmatpush1.msra.mxu0 0.0
    %249 = vmatprep.subr.mxu0 0.0
    %250 = vmatpush1.msra.mxu0 0.0
    %251 = vmatprep.subr.mxu0 0.0
    %252 = vmatpush1.msra.mxu0 0.0
    %253 = vmatprep.subr.mxu0 0.0
    %254 = vmatpush1.msra.mxu0 0.0
    %255 = vmatprep.subr.mxu0 0.0
    %256 = vmatpush1.msra.mxu0 0.0
    %257 = vmatprep.subr.mxu0 0.0
    %258 = vmatpush1.msra.mxu0 0.0
    %259 = vmatprep.subr.mxu0 0.0
    %260 = vmatpush1.msra.mxu0 0.0
    %261 = vmatprep.subr.mxu0 0.0
    %262 = vmatpush1.msra.mxu0 0.0
    %263 = vmatprep.subr.mxu0 0.0
    %264 = vmatpush1.msra.mxu0 0.0
    %265 = vmatprep.subr.mxu0 0.0
    %266 = vmatpush1.msra.mxu0 0.0
    %267 = vmatprep.subr.mxu0 0.0
    %268 = vmatpush1.msra.mxu0 0.0
    %269 = vmatprep.subr.mxu0 0.0
    %270 = vmatpush1.msra.mxu0 0.0
    %271 = vmatprep.subr.mxu0 0.0
    %272 = vmatpush1.msra.mxu0 0.0
    %273 = vmatprep.subr.mxu0 0.0
    %274 = vmatpush1.msra.mxu0 0.0
    %275 = vmatprep.subr.mxu0 0.0
    %276 = vmatpush1.msra.mxu0 0.0
    %277 = vmatprep.subr.mxu0 0.0
    %278 = vmatpush1.msra.mxu0 0.0
    %279 = vmatprep.mubr.f32.mxu0 0.0
    %280 = vmatmul.mubr.f32.gmra.mrb[0].mxu0 %v168
    %v281 = vpop.f32.mrb[0].mxu0
    %v282 = vadd.f32 0.0, %v281
    %v283 = vpop.f32.mrb[0].mxu0
    %284 = vmatprep.mubr.f32.mxu0 0.0
    %285 = vmatmul.mubr.f32.gmra.mrb[0].mxu0 %v171
    %v286 = vpop.f32.mrb[0].mxu0
    %v287 = vadd.f32 0.0, %v286
    %v288 = vpop.f32.mrb[0].mxu0
    %289 = vmatprep.mubr.f32.mxu0 0.0
    %290 = vmatmul.mubr.f32.gmra.mrb[0].mxu0 %v174
    %v291 = vpop.f32.mrb[0].mxu0
    %v292 = vadd.f32 0.0, %v291
    %v293 = vpop.f32.mrb[0].mxu0
    %294 = vmatprep.mubr.f32.mxu0 0.0
    %295 = vmatmul.mubr.f32.gmra.mrb[0].mxu0 %v177
    %v296 = vpop.f32.mrb[0].mxu0
    %v297 = vadd.f32 0.0, %v296
    %v298 = vpop.f32.mrb[0].mxu0
    %299 = vmatprep.mubr.f32.mxu0 0.0
    %300 = vmatmul.mubr.f32.gmra.mrb[0].mxu0 %v180
    %v301 = vpop.f32.mrb[0].mxu0
    %v302 = vadd.f32 0.0, %v301
    %v303 = vpop.f32.mrb[0].mxu0
    %304 = vmatprep.mubr.f32.mxu0 0.0
    %305 = vmatmul.mubr.f32.gmra.mrb[0].mxu0 %v183
    %v306 = vpop.f32.mrb[0].mxu0
    %v307 = vadd.f32 0.0, %v306
    %v308 = vpop.f32.mrb[0].mxu0
    %309 = vmatprep.mubr.f32.mxu0 0.0
    %310 = vmatmul.mubr.f32.gmra.mrb[0].mxu0 %v186
    %v311 = vpop.f32.mrb[0].mxu0
    %v312 = vadd.f32 0.0, %v311
    %v313 = vpop.f32.mrb[0].mxu0
    %314 = vmatprep.mubr.f32.mxu0 0.0
    %315 = vmatmul.mubr.f32.gmra.mrb[0].mxu0 %v189
    %v316 = vpop.f32.mrb[0].mxu0
    %v317 = vadd.f32 0.0, %v316
    %v318 = vpop.f32.mrb[0].mxu0
    %319 = vmatprep.mubr.f32.mxu0 0.0
    %320 = vmatmul.mubr.f32.gmra.mrb[0].mxu0 %v192
    %v321 = vpop.f32.mrb[0].mxu0
    %v322 = vadd.f32 0.0, %v321
    %v323 = vpop.f32.mrb[0].mxu0
    %324 = vmatprep.mubr.f32.mxu0 0.0
    %325 = vmatmul.mubr.f32.gmra.mrb[0].mxu0 %v195
    %v326 = vpop.f32.mrb[0].mxu0
    %v327 = vadd.f32 0.0, %v326
    %v328 = vpop.f32.mrb[0].mxu0
    %329 = vmatprep.mubr.f32.mxu0 0.0
    %330 = vmatmul.mubr.f32.gmra.mrb[0].mxu0 %v198
    %v331 = vpop.f32.mrb[0].mxu0
    %v332 = vadd.f32 0.0, %v331
    %v333 = vpop.f32.mrb[0].mxu0
    %334 = vmatprep.mubr.f32.mxu0 0.0
    %335 = vmatmul.mubr.f32.gmra.mrb[0].mxu0 %v201
    %v336 = vpop.f32.mrb[0].mxu0
    %v337 = vadd.f32 0.0, %v336
    %v338 = vpop.f32.mrb[0].mxu0
    %339 = vmatprep.mubr.f32.mxu0 0.0
    %340 = vmatmul.mubr.f32.gmra.mrb[0].mxu0 %v204
    %v341 = vpop.f32.mrb[0].mxu0
    %v342 = vadd.f32 0.0, %v341
    %v343 = vpop.f32.mrb[0].mxu0
    %344 = vmatprep.mubr.f32.mxu0 0.0
    %345 = vmatmul.mubr.f32.gmra.mrb[0].mxu0 %v207
    %v346 = vpop.f32.mrb[0].mxu0
    %v347 = vadd.f32 0.0, %v346
    %v348 = vpop.f32.mrb[0].mxu0
    %349 = vmatprep.mubr.f32.mxu0 0.0
    %350 = vmatmul.mubr.f32.gmra.mrb[0].mxu0 %v210
    %v351 = vpop.f32.mrb[0].mxu0
    %v352 = vadd.f32 0.0, %v351
    %v353 = vpop.f32.mrb[0].mxu0
    %354 = vmatprep.mubr.f32.mxu0 0.0
    %355 = vmatmul.mubr.f32.gmra.mrb[0].mxu0 %v213
    %v356 = vpop.f32.mrb[0].mxu0
    %v357 = vadd.f32 0.0, %v356
    %v358 = vpop.f32.mrb[0].mxu0
    %359 = vdwg.mxu0
    %v360 = vrot.slane %v120, 4
    %v361 = vadd.f32 %v120, %v360
    %v362 = vrot.slane %v361, 2
    %v363 = vadd.f32 %v361, %v362
    %v364 = vrot.slane %v363, 1
    %v365 = vadd.f32 %v363, %v364
    %v366 = vmul.f32 %v282, 0.01
    %v367 = vmul.f32 %v287, 0.01
    %v368 = vmul.f32 %v292, 0.01
    %v369 = vmul.f32 %v297, 0.01
    %v370 = vmul.f32 %v302, 0.01
    %v371 = vmul.f32 %v307, 0.01
    %v372 = vmul.f32 %v312, 0.01
    %v373 = vmul.f32 %v317, 0.01
    %v374 = vmul.f32 %v322, 0.01
    %v375 = vmul.f32 %v327, 0.01
    %v376 = vmul.f32 %v332, 0.01
    %v377 = vmul.f32 %v337, 0.01
    %v378 = vmul.f32 %v342, 0.01
    %v379 = vmul.f32 %v347, 0.01
    %v380 = vmul.f32 %v352, 0.01
    %v381 = vmul.f32 %v357, 0.01
    %v382 = vsub.f32 %v24, %v366
    %v383 = vsub.f32 %v25, %v367
    %v384 = vsub.f32 %v26, %v368
    %v385 = vsub.f32 %v27, %v369
    %v386 = vsub.f32 %v28, %v370
    %v387 = vsub.f32 %v29, %v371
    %v388 = vsub.f32 %v30, %v372
    %v389 = vsub.f32 %v31, %v373
    %v390 = vsub.f32 %v32, %v374
    %v391 = vsub.f32 %v33, %v375
    %v392 = vsub.f32 %v34, %v376
    %v393 = vsub.f32 %v35, %v377
    %v394 = vsub.f32 %v36, %v378
    %v395 = vsub.f32 %v37, %v379
    %v396 = vsub.f32 %v38, %v380
    %v397 = vsub.f32 %v39, %v381
    %398 = vst [vmem:[%s6] sm:$0xff] %v382
    %399 = vst [vmem:[%s6 + $0x8] sm:$0xff] %v383
    %400 = vst [vmem:[%s6 + $0x10] sm:$0xff] %v384
    %401 = vst [vmem:[%s6 + $0x18] sm:$0xff] %v385
    %402 = vst [vmem:[%s6 + $0x20] sm:$0xff] %v386
    %403 = vst [vmem:[%s6 + $0x28] sm:$0xff] %v387
    %404 = vst [vmem:[%s6 + $0x30] sm:$0xff] %v388
    %405 = vst [vmem:[%s6 + $0x38] sm:$0xff] %v389
    %406 = vst [vmem:[%s6 + $0x40] sm:$0xff] %v390
    %407 = vst [vmem:[%s6 + $0x48] sm:$0xff] %v391
    %408 = vst [vmem:[%s6 + $0x50] sm:$0xff] %v392
    %409 = vst [vmem:[%s6 + $0x58] sm:$0xff] %v393
    %410 = vst [vmem:[%s6 + $0x60] sm:$0xff] %v394
    %411 = vst [vmem:[%s6 + $0x68] sm:$0xff] %v395
    %412 = vst [vmem:[%s6 + $0x70] sm:$0xff] %v396
    %413 = vst [vmem:[%s6 + $0x78] sm:$0xff] %v397
    %v414 = vmul.f32 %v365, 0.01
    %v415 = vsub.f32 %v40, %v414
    %416 = vst [vmem:[%s7] sm:$0x1] %v415
    // Predicated region
    $region18: #{_trainer_step.1} parent=1 // pred_check
      _
    $region19: #{_trainer_step.1} parent=1 // pred_check_branch
      %418 = sbr.rel (0) target = $region21
    $region20: #{_trainer_step.1} parent=1 // pred_region
      %s420 = ssub.s32 128, 128
      %421 = vsyncadd [#allocation3], %s420
      %s423 = sshll.u32 [#allocation2], 4
      %s424 = int_to_ptr.vmem [resolvable:$true] %s423
      %426 = dma.vmem_to_hbm [thread:$0]  %s424, 128, %s4, [#allocation3]
    $region21: #{_trainer_step.1} parent=1 // pred_fallthru
      _
    // Predicated region
    $region22: #{_trainer_step.1} parent=1 // pred_check
      _
    $region23: #{_trainer_step.1} parent=1 // pred_check_branch
      %428 = sbr.rel (0) target = $region25
    $region24: #{_trainer_step.1} parent=1 // pred_region
      %s430 = ssub.s32 16, 16
      %431 = vsyncadd [#allocation4], %s430
      %434 = dma.smem_to_hbm [#allocation5], 16, %s5, [#allocation4]
    $region25: #{_trainer_step.1} parent=1 // pred_fallthru
      _
    // Predicated region
    $region26: #{_trainer_step.1} parent=1 // pred_check
      _
    $region27: #{_trainer_step.1} parent=1 // pred_check_branch
      %436 = sbr.rel (0) target = $region29
    $region28: #{_trainer_step.1} parent=1 // pred_region
      _
    $region29: #{_trainer_step.1} parent=1 // pred_fallthru
      _
    // Predicated region
    $region30: #{_trainer_step.1} parent=1 // pred_check
      _
    $region31: #{_trainer_step.1} parent=1 // pred_check_branch
      %438 = sbr.rel (0) target = $region33
    $region32: #{_trainer_step.1} parent=1 // pred_region
      _
    $region33: #{_trainer_step.1} parent=1 // pred_fallthru
      _
    // Predicated region
    $region34: #{_trainer_step.1} parent=1 // pred_check
      _
    $region35: #{_trainer_step.1} parent=1 // pred_check_branch
      %440 = sbr.rel (0) target = $region37
    $region36: #{_trainer_step.1} parent=1 // pred_region
      %441 = dma.done [#allocation3], 128
    $region37: #{_trainer_step.1} parent=1 // pred_fallthru
      _
    // Predicated region
    $region38: #{_trainer_step.1} parent=1 // pred_check
      _
    $region39: #{_trainer_step.1} parent=1 // pred_check_branch
      %443 = sbr.rel (0) target = $region41
    $region40: #{_trainer_step.1} parent=1 // pred_region
      %444 = dma.done [#allocation4], 16
    $region41: #{_trainer_step.1} parent=1 // pred_fallthru
      _
    // Predicated region
    $region42: #{_trainer_step.1} parent=1 // pred_check
      _
    $region43: #{_trainer_step.1} parent=1 // pred_check_branch
      %446 = sbr.rel (0) target = $region45
    $region44: #{_trainer_step.1} parent=1 // pred_region
      _
    $region45: #{_trainer_step.1} parent=1 // pred_fallthru
      _
    // Predicated region
    $region46: #{_trainer_step.1} parent=1 // pred_check
      _
    $region47: #{_trainer_step.1} parent=1 // pred_check_branch
      %448 = sbr.rel (0) target = $region49
    $region48: #{_trainer_step.1} parent=1 // pred_region
      _
    $region49: #{_trainer_step.1} parent=1 // pred_fallthru
      _
    %449 = sfence
    %450 = vsyncpa [#allocation3], 1
    %451 = vsyncpa [#allocation4], 1

</llo_original>
